<compile_context>
chip_gen: v5e
topology: v5e:2x2
jax: 0.10.0
libtpu: 0.0.40
codegen_flags: <defaults>
</compile_context>

<pallas_src>
import numpy as np
import jax
import jax.numpy as jnp
from jax.experimental import pallas as pl
from jax.experimental.pallas import tpu as pltpu


def _reflect_index(i, size):
    """PyTorch ReflectionPad index reflection for a (possibly OOB) index i."""
    if i < 0:
        i = -i
    if i > size - 1:
        i = 2 * (size - 1) - i
    return i


def _pad_amounts(target, current):
    """Same integer padding split as the PyTorch module."""
    lo = hi = 0
    if target != current:
        d = target - current
        if d % 2 == 0:
            lo = d // 2
            hi = d // 2
        else:
            lo = int(d / 2)
            hi = int(d - lo)
    return lo, hi


def upsample_reshape_eval(x1, x2, *, max_block_planes=1024):
    """Pallas implementation of UpsampleReshape_eval.forward(x1, x2)."""
    n1, c1, H1, W1 = x1.shape
    n2, c2, H2, W2 = x2.shape
    H_up, W_up = 2 * H2, 2 * W2

    left, right = _pad_amounts(W1, W_up)
    top, bot = _pad_amounts(H1, H_up)

    # Negative padding (x1 smaller than upsampled x2) would mean cropping;
    # the eval path of the PyTorch module always pads, so we assert.
    assert min(left, right, top, bot) >= 0, (
        "negative reflection padding (cropping) not supported")
    # ReflectionPad2d requires each pad < the padded dimension.
    assert top < H_up and bot < H_up and left < W_up and right < W_up, (
        "reflection padding must be smaller than the upsampled spatial size")

    out_H = H_up + top + bot     # == H1 when padded
    out_W = W_up + left + right  # == W1 when padded
    out_flat_w = out_H * out_W

    # Static source-index maps (compose nearest-upsample i//2 with reflection).
    row_src = [_reflect_index(o - top, H_up) // 2 for o in range(out_H)]
    col_src = [_reflect_index(p - left, W_up) // 2 for p in range(out_W)]

    # Lane-side (column) one-hot selection matrix, in the input dtype
    # (values are exactly 0/1 -> lossless in bf16/f16/f32).
    S_np = np.zeros((W2, out_W), dtype=np.float32)
    for p, v in enumerate(col_src):
        S_np[v, p] = 1.0
    S = jnp.asarray(S_np).astype(x2.dtype)

    nc = n2 * c2
    itemsize = np.dtype(x2.dtype).itemsize
    bytes_per_plane = (H2 * W2 + out_flat_w) * itemsize

    # Pick Cb: fit comfortably in VMEM (double-buffered blocks), keep >= 2 grid
    # steps when possible (so v7x's 2 TensorCores both get work), divide nc.
    vmem_block_budget = 8 * 1024 * 1024
    cb_cap = max(1, vmem_block_budget // bytes_per_plane)
    cb_cap = int(min(cb_cap, max_block_planes))
    target = min(cb_cap, nc if nc < 2 else max(1, nc // 2))
    Cb = max(d for d in range(1, target + 1) if nc % d == 0)
    G = nc // Cb

    vmem_limit = int(max(32 * 1024 * 1024,
                         min(64 * 1024 * 1024, 2 * Cb * bytes_per_plane + (2 << 20))))

    x2r = x2.reshape(nc, H2, W2)  # free contiguous reshape

    def kernel(x_ref, s_ref, o_ref):
        # x_ref: (Cb, H2, W2)   batch of planes (native dtype)
        # s_ref: (W2, out_W)    column-selection one-hot
        # o_ref: (1, Cb, out_H*out_W)  lane-flattened output slab
        s = s_ref[...]
        # One matmul per *source* row, batched over planes (M = Cb), f32 acc.
        rows = [
            jnp.dot(x_ref[:, h, :], s, preferred_element_type=jnp.float32)
            for h in range(H2)
        ]  # each (Cb, out_W)
        # Row expansion (nearest x2 + reflection pad) = static gather with
        # duplication -> assemble along lanes, one dense store.
        out = jnp.concatenate([rows[r] for r in row_src], axis=-1)  # (Cb, out_H*out_W)
        o_ref[0] = out.astype(o_ref.dtype)

    out3 = pl.pallas_call(
        kernel,
        out_shape=jax.ShapeDtypeStruct((G, Cb, out_flat_w), x2.dtype),
        grid_spec=pltpu.PrefetchScalarGridSpec(
            num_scalar_prefetch=0,
            grid=(G,),
            in_specs=[
                pl.BlockSpec((Cb, H2, W2), lambda i: (i, 0, 0)),
                pl.BlockSpec((W2, out_W), lambda i: (0, 0)),
            ],
            out_specs=pl.BlockSpec((1, Cb, out_flat_w), lambda i: (i, 0, 0)),
        ),
        compiler_params=pltpu.CompilerParams(
            dimension_semantics=("parallel",),
            vmem_limit_bytes=vmem_limit,
        ),
    )(x2r, S)

    # Free contiguous reshape back to NCHW.
    return out3.reshape(n2, c2, out_H, out_W)


def _reference(x1, x2):
    """Pure-JAX reference: nearest 2x upsample + reflection pad to x1 spatial."""
    n, c, H2, W2 = x2.shape
    _, _, H1, W1 = x1.shape
    up = jnp.repeat(jnp.repeat(x2, 2, axis=2), 2, axis=3)
    H_up, W_up = 2 * H2, 2 * W2
    left, right = _pad_amounts(W1, W_up)
    top, bot = _pad_amounts(H1, H_up)
    return jnp.pad(up, ((0, 0), (0, 0), (top, bot), (left, right)), mode="reflect")


if __name__ == "__main__":
    key = jax.random.PRNGKey(0)
    k1, k2 = jax.random.split(key)
    # x1 only supplies the target spatial shape; x2 is upsampled + reflect-padded.
    x1 = jax.random.normal(k1, (2, 4, 16, 17), dtype=jnp.float32)
    x2 = jax.random.normal(k2, (2, 4, 7, 7), dtype=jnp.float32)

    out = upsample_reshape_eval(x1, x2)
    out = jax.block_until_ready(out)

    ref = _reference(x1, x2)
    assert out.shape == (2, 4, 16, 17), out.shape
    np.testing.assert_allclose(np.asarray(out), np.asarray(ref), rtol=1e-5, atol=1e-5)

    print("KERNEL_OK")
</pallas_src>

<mosaic_0001>
module attributes {stable_mosaic.version = 11 : i64} {
  func.func @kernel(%arg0: i32, %arg1: memref<4x7x7xf32, #tpu.memory_space<vmem>>, %arg2: memref<7x17xf32, #tpu.memory_space<vmem>>, %arg3: memref<1x4x272xf32, #tpu.memory_space<vmem>>) attributes {dimension_semantics = [#tpu.dimension_semantics<parallel>], iteration_bounds = array<i64: 2>, scalar_prefetch = 0 : i64, scratch_operands = 0 : i64, tpu.core_type = #tpu.core_type<tc>, window_params = [{transform_indices = @transform_0, window_bounds = array<i64: 4, 7, 7>}, {pipeline_mode = #tpu.pipeline_mode<synchronous>, transform_indices = @transform_1, window_bounds = array<i64: 7, 17>}, {transform_indices = @transform_2, window_bounds = array<i64: 1, 4, 272>}]} {
    %c0 = arith.constant 0 : index
    %c0_0 = arith.constant 0 : index
    %0 = vector.load %arg2[%c0, %c0_0] : memref<7x17xf32, #tpu.memory_space<vmem>>, vector<7x17xf32>
    %c0_1 = arith.constant 0 : index
    %c0_2 = arith.constant 0 : index
    %c0_3 = arith.constant 0 : index
    %1 = vector.load %arg1[%c0_1, %c0_2, %c0_3] : memref<4x7x7xf32, #tpu.memory_space<vmem>>, vector<4x1x7xf32>
    %2 = vector.shape_cast %1 : vector<4x1x7xf32> to vector<4x7xf32>
    %cst = arith.constant dense<0.000000e+00> : vector<4x17xf32>
    %3 = tpu.matmul %2, %0, %cst {dimension_numbers = #tpu.dot_dimension_numbers<[1], [0], [0], [1], [0, 0, 1, 1], [], []>} : vector<4x7xf32>, vector<7x17xf32>, vector<4x17xf32> -> vector<4x17xf32>
    %c0_4 = arith.constant 0 : index
    %c1 = arith.constant 1 : index
    %c0_5 = arith.constant 0 : index
    %4 = vector.load %arg1[%c0_4, %c1, %c0_5] : memref<4x7x7xf32, #tpu.memory_space<vmem>>, vector<4x1x7xf32>
    %5 = vector.shape_cast %4 : vector<4x1x7xf32> to vector<4x7xf32>
    %cst_6 = arith.constant dense<0.000000e+00> : vector<4x17xf32>
    %6 = tpu.matmul %5, %0, %cst_6 {dimension_numbers = #tpu.dot_dimension_numbers<[1], [0], [0], [1], [0, 0, 1, 1], [], []>} : vector<4x7xf32>, vector<7x17xf32>, vector<4x17xf32> -> vector<4x17xf32>
    %c0_7 = arith.constant 0 : index
    %c2 = arith.constant 2 : index
    %c0_8 = arith.constant 0 : index
    %7 = vector.load %arg1[%c0_7, %c2, %c0_8] : memref<4x7x7xf32, #tpu.memory_space<vmem>>, vector<4x1x7xf32>
    %8 = vector.shape_cast %7 : vector<4x1x7xf32> to vector<4x7xf32>
    %cst_9 = arith.constant dense<0.000000e+00> : vector<4x17xf32>
    %9 = tpu.matmul %8, %0, %cst_9 {dimension_numbers = #tpu.dot_dimension_numbers<[1], [0], [0], [1], [0, 0, 1, 1], [], []>} : vector<4x7xf32>, vector<7x17xf32>, vector<4x17xf32> -> vector<4x17xf32>
    %c0_10 = arith.constant 0 : index
    %c3 = arith.constant 3 : index
    %c0_11 = arith.constant 0 : index
    %10 = vector.load %arg1[%c0_10, %c3, %c0_11] : memref<4x7x7xf32, #tpu.memory_space<vmem>>, vector<4x1x7xf32>
    %11 = vector.shape_cast %10 : vector<4x1x7xf32> to vector<4x7xf32>
    %cst_12 = arith.constant dense<0.000000e+00> : vector<4x17xf32>
    %12 = tpu.matmul %11, %0, %cst_12 {dimension_numbers = #tpu.dot_dimension_numbers<[1], [0], [0], [1], [0, 0, 1, 1], [], []>} : vector<4x7xf32>, vector<7x17xf32>, vector<4x17xf32> -> vector<4x17xf32>
    %c0_13 = arith.constant 0 : index
    %c4 = arith.constant 4 : index
    %c0_14 = arith.constant 0 : index
    %13 = vector.load %arg1[%c0_13, %c4, %c0_14] : memref<4x7x7xf32, #tpu.memory_space<vmem>>, vector<4x1x7xf32>
    %14 = vector.shape_cast %13 : vector<4x1x7xf32> to vector<4x7xf32>
    %cst_15 = arith.constant dense<0.000000e+00> : vector<4x17xf32>
    %15 = tpu.matmul %14, %0, %cst_15 {dimension_numbers = #tpu.dot_dimension_numbers<[1], [0], [0], [1], [0, 0, 1, 1], [], []>} : vector<4x7xf32>, vector<7x17xf32>, vector<4x17xf32> -> vector<4x17xf32>
    %c0_16 = arith.constant 0 : index
    %c5 = arith.constant 5 : index
    %c0_17 = arith.constant 0 : index
    %16 = vector.load %arg1[%c0_16, %c5, %c0_17] : memref<4x7x7xf32, #tpu.memory_space<vmem>>, vector<4x1x7xf32>
    %17 = vector.shape_cast %16 : vector<4x1x7xf32> to vector<4x7xf32>
    %cst_18 = arith.constant dense<0.000000e+00> : vector<4x17xf32>
    %18 = tpu.matmul %17, %0, %cst_18 {dimension_numbers = #tpu.dot_dimension_numbers<[1], [0], [0], [1], [0, 0, 1, 1], [], []>} : vector<4x7xf32>, vector<7x17xf32>, vector<4x17xf32> -> vector<4x17xf32>
    %c0_19 = arith.constant 0 : index
    %c6 = arith.constant 6 : index
    %c0_20 = arith.constant 0 : index
    %19 = vector.load %arg1[%c0_19, %c6, %c0_20] : memref<4x7x7xf32, #tpu.memory_space<vmem>>, vector<4x1x7xf32>
    %20 = vector.shape_cast %19 : vector<4x1x7xf32> to vector<4x7xf32>
    %cst_21 = arith.constant dense<0.000000e+00> : vector<4x17xf32>
    %21 = tpu.matmul %20, %0, %cst_21 {dimension_numbers = #tpu.dot_dimension_numbers<[1], [0], [0], [1], [0, 0, 1, 1], [], []>} : vector<4x7xf32>, vector<7x17xf32>, vector<4x17xf32> -> vector<4x17xf32>
    %22 = tpu.concatenate %3, %3, %3, %6, %6, %9, %9, %12, %12, %15, %15, %18, %18, %21, %21, %21 in 1 : vector<4x17xf32>, vector<4x17xf32>, vector<4x17xf32>, vector<4x17xf32>, vector<4x17xf32>, vector<4x17xf32>, vector<4x17xf32>, vector<4x17xf32>, vector<4x17xf32>, vector<4x17xf32>, vector<4x17xf32>, vector<4x17xf32>, vector<4x17xf32>, vector<4x17xf32>, vector<4x17xf32>, vector<4x17xf32> -> vector<4x272xf32>
    %c0_22 = arith.constant 0 : index
    %c0_23 = arith.constant 0 : index
    %c0_24 = arith.constant 0 : index
    %23 = vector.load %arg3[%c0_22, %c0_23, %c0_24] : memref<1x4x272xf32, #tpu.memory_space<vmem>>, vector<1x4x272xf32>
    %24 = vector.shape_cast %23 : vector<1x4x272xf32> to vector<4x272xf32>
    %25 = vector.shape_cast %22 : vector<4x272xf32> to vector<1x4x272xf32>
    tpu.vector_store %arg3[%c0_22, %c0_23, %c0_24], %25 {strides = array<i32>} : memref<1x4x272xf32, #tpu.memory_space<vmem>>, vector<1x4x272xf32>,
    return
  }
  func.func @transform_0(%arg0: i32) -> (i32, i32, i32) {
    %c0_i32 = arith.constant 0 : i32
    %c0_i32_0 = arith.constant 0 : i32
    %c0_i32_1 = arith.constant 0 : i32
    return %arg0, %c0_i32, %c0_i32_0 : i32, i32, i32
  }
  func.func @transform_1(%arg0: i32) -> (i32, i32) {
    %c0_i32 = arith.constant 0 : i32
    %c0_i32_0 = arith.constant 0 : i32
    %c0_i32_1 = arith.constant 0 : i32
    return %c0_i32, %c0_i32_0 : i32, i32
  }
  func.func @transform_2(%arg0: i32) -> (i32, i32, i32) {
    %c0_i32 = arith.constant 0 : i32
    %c0_i32_0 = arith.constant 0 : i32
    %c0_i32_1 = arith.constant 0 : i32
    return %arg0, %c0_i32, %c0_i32_0 : i32, i32, i32
  }
}

</mosaic_0001>

<llo_original>
// kernel: tpu_custom_call.1
$region0: #{tpu_custom_call.1}
  #allocation0 [shape = 'u32[]', space=smem, size = 0x4, offset = 0x4, fixed_abs, tag = 'smem constant byte address 0x4 - core index']
  #allocation1 [shape = 'u32[72,128]{1,0:T(1,128)}', space=vmem, size = 0x9000, scoped, tag = 'internal scratch']
  %s0 = inlined_call_operand.vmem [shape: f32[8,7,7], index: 0, kind: input, shape index: {}]
  %s1 = inlined_call_operand.vmem [shape: f32[7,17], index: 1, kind: input, shape index: {}]
  %s2 = inlined_call_operand.hbm [shape: f32[2,4,272], index: 2, kind: output, shape index: {}]
  %s3 = sld [smem:[#allocation0]]
  $region41: #{tpu_custom_call.1} parent=0
    _
  %s5 = ssub.s32 1, %s3
  %s6 = scalar_select 0, %s5, %s3
  $region1: #{tpu_custom_call.1} parent=0
    #allocation2 [shape = 'u8[12288]{0}', space=vmem, size = 0x3000, scoped, tag = 'output window, operand 0']
    #allocation3 [shape = 's32[2]{0}', space=sflag, size = 0x8, scoped, tag = 'scoped memory for tpu_custom_call.1']
    %7 = vsyncpa [#allocation3], 0
    %s8 = scalar_lea.sflag [#allocation3], 1
    %9 = vsyncpa %s8, 0
    loop: start=0, step=1, limit=4
    $region2: #{tpu_custom_call.1} parent=1 // loop_pre_header
      _
    $region3: #{tpu_custom_call.1} parent=1 // loop_header
      %s11 = sphi 0, %s15
      %p12 = scmp.ge.s32.totalorder %s11, 4
      %s21 = sphi 0, %s23
      %s24 = sphi 0, %s21
      %s25 = sphi 0, %s24
      %s41 = sphi 0, %s25
      %s45 = sphi 0, %s45
      %s47 = sphi 0, %s45
      %s48 = sphi 0, %s47
      %s62 = sphi 0, %s48
      %s68 = sphi 0, %s70
      %s71 = sphi 0, %s68
      %s72 = sphi 0, %s71
      %s88 = sphi 0, %s72
    $region4: #{tpu_custom_call.1} parent=1 // loop_header_branch
      %14 = sbr.rel (%p12) target = $region8
    $region5: #{tpu_custom_call.1} parent=1 // loop_body
      %s16 = ssub.s32 %s11, 1
      %s17 = ssub.s32 %s11, 2
      %s18 = sadd.s32 %s11, 1
      %s19 = ssub.s32 %s11, %s18
      %p20 = scmp.eq.s32.totalorder %s19, 0
      %s22 = sadd.s32 %s21, 1
      %s23 = scalar_select %p20, %s21, %s22
      %p26 = pneg %p20
      %p27 = scmp.eq.s32.totalorder %s11, 1
      %p28 = por %p26, %p27
      %p29 = scmp.ne.s32.totalorder %s21, %s24
      %p30 = scmp.eq.s32.totalorder %s11, 0
      %p31 = por %p29, %p30
      %p32 = scmp.ne.s32.totalorder %s21, %s24
      %p33 = scmp.eq.s32.totalorder %s16, 1
      %p34 = por %p32, %p33
      %p35 = scmp.ne.s32.totalorder %s24, %s25
      %p36 = scmp.eq.s32.totalorder %s16, 0
      %p37 = por %p35, %p36
      %p38 = scmp.ne.s32.totalorder %s24, %s25
      %p39 = scmp.eq.s32.totalorder %s17, 1
      %p40 = por %p38, %p39
      %p42 = scmp.ne.s32.totalorder %s25, %s41
      %p43 = scmp.eq.s32.totalorder %s17, 0
      %p44 = por %p42, %p43
      %s46 = sadd.s32 %s45, 1
      %p49 = scmp.eq.s32.totalorder %s11, 1
      %p50 = scmp.ne.s32.totalorder %s45, %s47
      %p51 = scmp.eq.s32.totalorder %s11, 0
      %p52 = por %p50, %p51
      %p53 = scmp.ne.s32.totalorder %s45, %s47
      %p54 = scmp.eq.s32.totalorder %s16, 1
      %p55 = por %p53, %p54
      %p56 = scmp.ne.s32.totalorder %s47, %s48
      %p57 = scmp.eq.s32.totalorder %s16, 0
      %p58 = por %p56, %p57
      %p59 = scmp.ne.s32.totalorder %s47, %s48
      %p60 = scmp.eq.s32.totalorder %s17, 1
      %p61 = por %p59, %p60
      %p63 = scmp.ne.s32.totalorder %s48, %s62
      %p64 = scmp.eq.s32.totalorder %s17, 0
      %p65 = por %p63, %p64
      %s66 = ssub.s32 %s11, %s18
      %p67 = scmp.eq.s32.totalorder %s66, 0
      %s69 = sadd.s32 %s68, 1
      %s70 = scalar_select %p67, %s68, %s69
      %p73 = pneg %p67
      %p74 = scmp.eq.s32.totalorder %s11, 1
      %p75 = por %p73, %p74
      %p76 = scmp.ne.s32.totalorder %s68, %s71
      %p77 = scmp.eq.s32.totalorder %s11, 0
      %p78 = por %p76, %p77
      %p79 = scmp.ne.s32.totalorder %s68, %s71
      %p80 = scmp.eq.s32.totalorder %s16, 1
      %p81 = por %p79, %p80
      %p82 = scmp.ne.s32.totalorder %s71, %s72
      %p83 = scmp.eq.s32.totalorder %s16, 0
      %p84 = por %p82, %p83
      %p85 = scmp.ne.s32.totalorder %s71, %s72
      %p86 = scmp.eq.s32.totalorder %s17, 1
      %p87 = por %p85, %p86
      %p89 = scmp.ne.s32.totalorder %s72, %s88
      %p90 = scmp.eq.s32.totalorder %s17, 0
      %p91 = por %p89, %p90
      %p92 = scmp.le.s32.totalorder 1, %s11
      %p93 = scmp.lt.s32.totalorder %s11, 3
      %p94 = pnand %p92, %p93
      %p95 = pneg %p94
      // Predicated region
      $region9: #{tpu_custom_call.1} parent=5 // pred_check
        _
      $region10: #{tpu_custom_call.1} parent=5 // pred_check_branch
        %97 = sbr.rel (%p94) target = $region12
      $region11: #{tpu_custom_call.1} parent=5 // pred_region
        %s98 = ssub.s32 %s11, 1
        // Predicated region
        $region13: #{tpu_custom_call.1} parent=11 // pred_check
          %p99 = pneg %p58
        $region14: #{tpu_custom_call.1} parent=11 // pred_check_branch
          %101 = sbr.rel (%p99) target = $region16
        $region15: #{tpu_custom_call.1} parent=11 // pred_region
          _
        $region16: #{tpu_custom_call.1} parent=11 // pred_fallthru
          _
      $region12: #{tpu_custom_call.1} parent=5 // pred_fallthru
        _
      %p102 = scmp.lt.s32.totalorder %s11, 2
      // Predicated region
      $region17: #{tpu_custom_call.1} parent=5 // pred_check
        %p103 = pneg %p102
      $region18: #{tpu_custom_call.1} parent=5 // pred_check_branch
        %105 = sbr.rel (%p103) target = $region20
      $region19: #{tpu_custom_call.1} parent=5 // pred_region
        // Predicated region
        $region21: #{tpu_custom_call.1} parent=19 // pred_check
          %p106 = pneg %p31
        $region22: #{tpu_custom_call.1} parent=19 // pred_check_branch
          %108 = sbr.rel (%p106) target = $region24
        $region23: #{tpu_custom_call.1} parent=19 // pred_region
          %s109 = smul.u32 4, %s11
          %p110 = scmp.lt.s32.totalorder %s109, 7
          %s111 = scalar_select %p110, %s109, 7
          %s112 = smul.addr %s111, 8
          %s113 = scalar_lea.vmem %s0, %s112
          %s114 = smul.u32 4, %s11
        $region24: #{tpu_custom_call.1} parent=19 // pred_fallthru
          _
      $region20: #{tpu_custom_call.1} parent=5 // pred_fallthru
        _
      %p115 = scmp.le.s32.totalorder 1, %s11
      %p116 = scmp.lt.s32.totalorder %s11, 3
      %p117 = pnand %p115, %p116
      %p118 = pneg %p117
      // Predicated region
      $region25: #{tpu_custom_call.1} parent=5 // pred_check
        _
      $region26: #{tpu_custom_call.1} parent=5 // pred_check_branch
        %120 = sbr.rel (%p117) target = $region28
      $region27: #{tpu_custom_call.1} parent=5 // pred_region
        %s121 = ssub.s32 %s11, 1
        %s122 = smul.u32 4, %s16
        %p123 = scmp.lt.s32.totalorder %s122, 7
        %s124 = scalar_select %p123, %s122, 7
        %s125 = smul.addr %s124, 8
        %s126 = scalar_lea.vmem %s0, %s125
        %p127 = pneg %p37
        %p128 = pneg %p34
        %p129 = pneg %p58
        %p130 = pneg %p55
        %p131 = pneg %p84
        %p132 = pneg %p81
        %s133 = sand.u32 %s71, 1
        %s134 = scalar_lea.sflag [#allocation3], %s133
        %s135 = sand.u32 %s71, 1
        %s136 = smul.addr %s135, 12
        %s137 = scalar_lea.vmem [#allocation2], %s136
        %s138 = smul.u32 4, %s16
        %p139 = scmp.lt.s32.totalorder %s138, 7
        %s140 = scalar_select %p139, %s138, 7
        %s141 = smul.addr %s140, 8
        %s142 = scalar_lea.vmem %s0, %s141
        %s143 = smul.u32 4, %s16
        %v144 = vld [vmem:[%s1] sm:$0x7f]
        %v145 = vld [vmem:[%s142] sm:$0x1]
        %v146 = vld [vmem:[%s142 + $0x8] sm:$0x1]
        %v147 = vld [vmem:[%s142 + $0x10] sm:$0x1]
        %v148 = vld [vmem:[%s142 + $0x18] sm:$0x1]
        %v153 = vrot.slane %v146, 7
        %vm154 = vcmask 1041409
        %v155 = vsel %vm154, %v153, %v145
        %v156 = vrot.slane %v147, 6
        %vm157 = vcmask 1042434
        %v158 = vsel %vm157, %v156, %v155
        %v159 = vrot.slane %v148, 5
        %vm160 = vcmask 1043459
        %v161 = vsel %vm160, %v159, %v158
        %vm162 = vcmask 56320
        %v163 = vsel %vm162, %v161, 0
        %vm165 = vcmask 1046528
        %v167 = vsel %vm165, %v144, 0
        %169 = vmatpush.msra.mxu0 0.0
        %170 = vmatpush.msra.mxu0 0.0
        %171 = vmatpush.msra.mxu0 0.0
        %172 = vmatpush.msra.mxu0 0.0
        %173 = vmatpush.msra.mxu0 0.0
        %174 = vmatpush.msra.mxu0 0.0
        %175 = vmatpush.msra.mxu0 0.0
        %176 = vmatpush.msra.mxu0 0.0
        %177 = vmatpush.msra.mxu0 0.0
        %178 = vmatpush.msra.mxu0 0.0
        %179 = vmatpush.msra.mxu0 0.0
        %180 = vmatpush.msra.mxu0 0.0
        %181 = vmatpush.msra.mxu0 0.0
        %182 = vmatpush.msra.mxu0 0.0
        %183 = vmatpush.msra.mxu0 0.0
        %184 = vmatpush.msra.mxu0 %v167
        %185 = vmatmul.f32.gmra.mxu0 %v163
        %v186 = vpop.f32.mrf.mxu0
        %v187 = vadd.f32 0.0, %v186
        %188 = vdwg.mxu0
        %v189 = vld [vmem:[%s142 + $0x1] sm:$0x1]
        %v190 = vld [vmem:[%s142 + $0x9] sm:$0x1]
        %v191 = vld [vmem:[%s142 + $0x11] sm:$0x1]
        %v192 = vld [vmem:[%s142 + $0x19] sm:$0x1]
        %v197 = vrot.slane %v190, 7
        %v198 = vsel %vm154, %v197, %v189
        %v199 = vrot.slane %v191, 6
        %v200 = vsel %vm157, %v199, %v198
        %v201 = vrot.slane %v192, 5
        %v202 = vsel %vm160, %v201, %v200
        %v203 = vsel %vm162, %v202, 0
        %205 = vmatpush.msra.mxu0 0.0
        %206 = vmatpush.msra.mxu0 0.0
        %207 = vmatpush.msra.mxu0 0.0
        %208 = vmatpush.msra.mxu0 0.0
        %209 = vmatpush.msra.mxu0 0.0
        %210 = vmatpush.msra.mxu0 0.0
        %211 = vmatpush.msra.mxu0 0.0
        %212 = vmatpush.msra.mxu0 0.0
        %213 = vmatpush.msra.mxu0 0.0
        %214 = vmatpush.msra.mxu0 0.0
        %215 = vmatpush.msra.mxu0 0.0
        %216 = vmatpush.msra.mxu0 0.0
        %217 = vmatpush.msra.mxu0 0.0
        %218 = vmatpush.msra.mxu0 0.0
        %219 = vmatpush.msra.mxu0 0.0
        %220 = vmatpush.msra.mxu0 %v167
        %221 = vmatmul.f32.gmra.mxu0 %v203
        %v222 = vpop.f32.mrf.mxu0
        %v223 = vadd.f32 0.0, %v222
        %224 = vdwg.mxu0
        %v225 = vld [vmem:[%s142 + $0x2] sm:$0x1]
        %v226 = vld [vmem:[%s142 + $0xa] sm:$0x1]
        %v227 = vld [vmem:[%s142 + $0x12] sm:$0x1]
        %v228 = vld [vmem:[%s142 + $0x1a] sm:$0x1]
        %v233 = vrot.slane %v226, 7
        %v234 = vsel %vm154, %v233, %v225
        %v235 = vrot.slane %v227, 6
        %v236 = vsel %vm157, %v235, %v234
        %v237 = vrot.slane %v228, 5
        %v238 = vsel %vm160, %v237, %v236
        %v239 = vsel %vm162, %v238, 0
        %241 = vmatpush.msra.mxu0 0.0
        %242 = vmatpush.msra.mxu0 0.0
        %243 = vmatpush.msra.mxu0 0.0
        %244 = vmatpush.msra.mxu0 0.0
        %245 = vmatpush.msra.mxu0 0.0
        %246 = vmatpush.msra.mxu0 0.0
        %247 = vmatpush.msra.mxu0 0.0
        %248 = vmatpush.msra.mxu0 0.0
        %249 = vmatpush.msra.mxu0 0.0
        %250 = vmatpush.msra.mxu0 0.0
        %251 = vmatpush.msra.mxu0 0.0
        %252 = vmatpush.msra.mxu0 0.0
        %253 = vmatpush.msra.mxu0 0.0
        %254 = vmatpush.msra.mxu0 0.0
        %255 = vmatpush.msra.mxu0 0.0
        %256 = vmatpush.msra.mxu0 %v167
        %257 = vmatmul.f32.gmra.mxu0 %v239
        %v258 = vpop.f32.mrf.mxu0
        %v259 = vadd.f32 0.0, %v258
        %260 = vdwg.mxu0
        %v261 = vld [vmem:[%s142 + $0x3] sm:$0x1]
        %v262 = vld [vmem:[%s142 + $0xb] sm:$0x1]
        %v263 = vld [vmem:[%s142 + $0x13] sm:$0x1]
        %v264 = vld [vmem:[%s142 + $0x1b] sm:$0x1]
        %v269 = vrot.slane %v262, 7
        %v270 = vsel %vm154, %v269, %v261
        %v271 = vrot.slane %v263, 6
        %v272 = vsel %vm157, %v271, %v270
        %v273 = vrot.slane %v264, 5
        %v274 = vsel %vm160, %v273, %v272
        %v275 = vsel %vm162, %v274, 0
        %277 = vmatpush.msra.mxu0 0.0
        %278 = vmatpush.msra.mxu0 0.0
        %279 = vmatpush.msra.mxu0 0.0
        %280 = vmatpush.msra.mxu0 0.0
        %281 = vmatpush.msra.mxu0 0.0
        %282 = vmatpush.msra.mxu0 0.0
        %283 = vmatpush.msra.mxu0 0.0
        %284 = vmatpush.msra.mxu0 0.0
        %285 = vmatpush.msra.mxu0 0.0
        %286 = vmatpush.msra.mxu0 0.0
        %287 = vmatpush.msra.mxu0 0.0
        %288 = vmatpush.msra.mxu0 0.0
        %289 = vmatpush.msra.mxu0 0.0
        %290 = vmatpush.msra.mxu0 0.0
        %291 = vmatpush.msra.mxu0 0.0
        %292 = vmatpush.msra.mxu0 %v167
        %293 = vmatmul.f32.gmra.mxu0 %v275
        %v294 = vpop.f32.mrf.mxu0
        %v295 = vadd.f32 0.0, %v294
        %296 = vdwg.mxu0
        %v297 = vld [vmem:[%s142 + $0x4] sm:$0x1]
        %v298 = vld [vmem:[%s142 + $0xc] sm:$0x1]
        %v299 = vld [vmem:[%s142 + $0x14] sm:$0x1]
        %v300 = vld [vmem:[%s142 + $0x1c] sm:$0x1]
        %v305 = vrot.slane %v298, 7
        %v306 = vsel %vm154, %v305, %v297
        %v307 = vrot.slane %v299, 6
        %v308 = vsel %vm157, %v307, %v306
        %v309 = vrot.slane %v300, 5
        %v310 = vsel %vm160, %v309, %v308
        %v311 = vsel %vm162, %v310, 0
        %313 = vmatpush.msra.mxu0 0.0
        %314 = vmatpush.msra.mxu0 0.0
        %315 = vmatpush.msra.mxu0 0.0
        %316 = vmatpush.msra.mxu0 0.0
        %317 = vmatpush.msra.mxu0 0.0
        %318 = vmatpush.msra.mxu0 0.0
        %319 = vmatpush.msra.mxu0 0.0
        %320 = vmatpush.msra.mxu0 0.0
        %321 = vmatpush.msra.mxu0 0.0
        %322 = vmatpush.msra.mxu0 0.0
        %323 = vmatpush.msra.mxu0 0.0
        %324 = vmatpush.msra.mxu0 0.0
        %325 = vmatpush.msra.mxu0 0.0
        %326 = vmatpush.msra.mxu0 0.0
        %327 = vmatpush.msra.mxu0 0.0
        %328 = vmatpush.msra.mxu0 %v167
        %329 = vmatmul.f32.gmra.mxu0 %v311
        %v330 = vpop.f32.mrf.mxu0
        %v331 = vadd.f32 0.0, %v330
        %332 = vdwg.mxu0
        %v333 = vld [vmem:[%s142 + $0x5] sm:$0x1]
        %v334 = vld [vmem:[%s142 + $0xd] sm:$0x1]
        %v335 = vld [vmem:[%s142 + $0x15] sm:$0x1]
        %v336 = vld [vmem:[%s142 + $0x1d] sm:$0x1]
        %v341 = vrot.slane %v334, 7
        %v342 = vsel %vm154, %v341, %v333
        %v343 = vrot.slane %v335, 6
        %v344 = vsel %vm157, %v343, %v342
        %v345 = vrot.slane %v336, 5
        %v346 = vsel %vm160, %v345, %v344
        %v347 = vsel %vm162, %v346, 0
        %349 = vmatpush.msra.mxu0 0.0
        %350 = vmatpush.msra.mxu0 0.0
        %351 = vmatpush.msra.mxu0 0.0
        %352 = vmatpush.msra.mxu0 0.0
        %353 = vmatpush.msra.mxu0 0.0
        %354 = vmatpush.msra.mxu0 0.0
        %355 = vmatpush.msra.mxu0 0.0
        %356 = vmatpush.msra.mxu0 0.0
        %357 = vmatpush.msra.mxu0 0.0
        %358 = vmatpush.msra.mxu0 0.0
        %359 = vmatpush.msra.mxu0 0.0
        %360 = vmatpush.msra.mxu0 0.0
        %361 = vmatpush.msra.mxu0 0.0
        %362 = vmatpush.msra.mxu0 0.0
        %363 = vmatpush.msra.mxu0 0.0
        %364 = vmatpush.msra.mxu0 %v167
        %365 = vmatmul.f32.gmra.mxu0 %v347
        %v366 = vpop.f32.mrf.mxu0
        %v367 = vadd.f32 0.0, %v366
        %368 = vdwg.mxu0
        %v369 = vld [vmem:[%s142 + $0x6] sm:$0x1]
        %v370 = vld [vmem:[%s142 + $0xe] sm:$0x1]
        %v371 = vld [vmem:[%s142 + $0x16] sm:$0x1]
        %v372 = vld [vmem:[%s142 + $0x1e] sm:$0x1]
        %v377 = vrot.slane %v370, 7
        %v378 = vsel %vm154, %v377, %v369
        %v379 = vrot.slane %v371, 6
        %v380 = vsel %vm157, %v379, %v378
        %v381 = vrot.slane %v372, 5
        %v382 = vsel %vm160, %v381, %v380
        %v383 = vsel %vm162, %v382, 0
        %385 = vmatpush.msra.mxu0 0.0
        %386 = vmatpush.msra.mxu0 0.0
        %387 = vmatpush.msra.mxu0 0.0
        %388 = vmatpush.msra.mxu0 0.0
        %389 = vmatpush.msra.mxu0 0.0
        %390 = vmatpush.msra.mxu0 0.0
        %391 = vmatpush.msra.mxu0 0.0
        %392 = vmatpush.msra.mxu0 0.0
        %393 = vmatpush.msra.mxu0 0.0
        %394 = vmatpush.msra.mxu0 0.0
        %395 = vmatpush.msra.mxu0 0.0
        %396 = vmatpush.msra.mxu0 0.0
        %397 = vmatpush.msra.mxu0 0.0
        %398 = vmatpush.msra.mxu0 0.0
        %399 = vmatpush.msra.mxu0 0.0
        %400 = vmatpush.msra.mxu0 %v167
        %401 = vmatmul.f32.gmra.mxu0 %v383
        %v402 = vpop.f32.mrf.mxu0
        %v403 = vadd.f32 0.0, %v402
        %404 = vdwg.mxu0
        %406 = vrot.lane.b32.xlu0 %v187, 17
        %v407 = vpop.permute.xlu0 %406
        %409 = vrot.lane.b32.xlu0 %v187, 34
        %v410 = vpop.permute.xlu0 %409
        %413 = vrot.lane.b32.xlu0 %v223, 51
        %v414 = vpop.permute.xlu0 %413
        %416 = vrot.lane.b32.xlu0 %v223, 68
        %v417 = vpop.permute.xlu0 %416
        %420 = vrot.lane.b32.xlu0 %v259, 85
        %v421 = vpop.permute.xlu0 %420
        %423 = vrot.lane.b32.xlu0 %v259, 102
        %v424 = vpop.permute.xlu0 %423
        %427 = vrot.lane.b32.xlu0 %v295, 119
        %v428 = vpop.permute.xlu0 %427
        %430 = vrot.lane.b32.xlu0 %v295, 8
        %v431 = vpop.permute.xlu0 %430
        %434 = vrot.lane.b32.xlu0 %v331, 25
        %v435 = vpop.permute.xlu0 %434
        %437 = vrot.lane.b32.xlu0 %v331, 42
        %v438 = vpop.permute.xlu0 %437
        %441 = vrot.lane.b32.xlu0 %v367, 59
        %v442 = vpop.permute.xlu0 %441
        %444 = vrot.lane.b32.xlu0 %v367, 76
        %v445 = vpop.permute.xlu0 %444
        %448 = vrot.lane.b32.xlu0 %v403, 93
        %v449 = vpop.permute.xlu0 %448
        %451 = vrot.lane.b32.xlu0 %v403, 110
        %v452 = vpop.permute.xlu0 %451
        %454 = vrot.lane.b32.xlu0 %v403, 127
        %v455 = vpop.permute.xlu0 %454
        %vm457 = vcmask 138240
        %v458 = vsel %vm457, %v187, %v407
        %vm459 = vcmask 277504
        %v460 = vsel %vm459, %v458, %v410
        %vm461 = vcmask 416768
        %v462 = vsel %vm461, %v460, %v414
        %vm463 = vcmask 556032
        %v464 = vsel %vm463, %v462, %v417
        %vm465 = vcmask 695296
        %v466 = vsel %vm465, %v464, %v421
        %vm467 = vcmask 834560
        %v468 = vsel %vm467, %v466, %v424
        %vm469 = vcmask 973824
        %v470 = vsel %vm469, %v468, %v428
        %vm471 = vcmask 64512
        %v472 = vsel %vm471, %v428, %v431
        %vm473 = vcmask 203776
        %v474 = vsel %vm473, %v472, %v435
        %vm475 = vcmask 343040
        %v476 = vsel %vm475, %v474, %v438
        %vm477 = vcmask 482304
        %v478 = vsel %vm477, %v476, %v442
        %vm479 = vcmask 621568
        %v480 = vsel %vm479, %v478, %v445
        %vm481 = vcmask 760832
        %v482 = vsel %vm481, %v480, %v449
        %vm483 = vcmask 900096
        %v484 = vsel %vm483, %v482, %v452
        %vm485 = vcmask 1039360
        %v486 = vsel %vm485, %v484, %v455
        %v489 = vrot.slane %v486, 4
        %vm490 = vcmask 1043456
        %v491 = vsel %vm490, %v470, %v489
        %493 = vst [vmem:[%s137] sm:$0xff] %v491
        %vm494 = vcmask 125952
        %495 = vst.msk [vmem:[%s137 + $0x8] sm:$0xf] %vm494, %v455
        %s496 = sand.u32 %s71, 1
        %s497 = scalar_lea.sflag [#allocation3], %s496
        %s498 = sand.u32 %s71, 1
        %s499 = smul.addr %s498, 12
        %s500 = scalar_lea.vmem [#allocation2], %s499
        // Predicated region
        $region29: #{tpu_custom_call.1} parent=27 // pred_check
          %p501 = pneg %p81
        $region30: #{tpu_custom_call.1} parent=27 // pred_check_branch
          %503 = sbr.rel (%p501) target = $region32
        $region31: #{tpu_custom_call.1} parent=27 // pred_region
          %505 = vsyncadd %s497, 0
          %s506 = smul.addr %s16, 3
          %s507 = smul.addr %s506, 4
          %s508 = scalar_lea.hbm %s2, %s507
          %s510 = sshll.u32 %s500, 4
          %s511 = int_to_ptr.vmem [resolvable:$true] %s510
          %s512 = sshll.u32 %s508, 4
          %s513 = int_to_ptr.hbm [resolvable:$true] %s512
          %515 = dma.vmem_to_hbm [thread:$0]  %s511, 192, %s513, %s497
        $region32: #{tpu_custom_call.1} parent=27 // pred_fallthru
          _
      $region28: #{tpu_custom_call.1} parent=5 // pred_fallthru
        _
      %p516 = scmp.le.s32.totalorder 2, %s11
      // Predicated region
      $region33: #{tpu_custom_call.1} parent=5 // pred_check
        %p517 = pneg %p516
      $region34: #{tpu_custom_call.1} parent=5 // pred_check_branch
        %519 = sbr.rel (%p517) target = $region36
      $region35: #{tpu_custom_call.1} parent=5 // pred_region
        %s520 = ssub.s32 %s11, 2
        // Predicated region
        $region37: #{tpu_custom_call.1} parent=35 // pred_check
          %p521 = pneg %p87
        $region38: #{tpu_custom_call.1} parent=35 // pred_check_branch
          %523 = sbr.rel (%p521) target = $region40
        $region39: #{tpu_custom_call.1} parent=35 // pred_region
          %s524 = sand.u32 %s72, 1
          %s525 = scalar_lea.sflag [#allocation3], %s524
          %s526 = sand.u32 %s72, 1
          %s527 = smul.addr %s526, 12
          %s528 = scalar_lea.vmem [#allocation2], %s527
          %530 = dma.done %s525, 192
        $region40: #{tpu_custom_call.1} parent=35 // pred_fallthru
          _
      $region36: #{tpu_custom_call.1} parent=5 // pred_fallthru
        _
    $region6: #{tpu_custom_call.1} parent=1 // loop_footer
      %s15 = sadd.s32 1, %s11
    $region7: #{tpu_custom_call.1} parent=1 // loop_footer_branch
      %10 = sbr.rel target = $region3
    $region8: #{tpu_custom_call.1} parent=1 // loop_exit
      _
    %531 = vsyncpa [#allocation3], 1
    %s532 = scalar_lea.sflag [#allocation3], 1
    %533 = vsyncpa %s532, 1

</llo_original>
